<compile_context>
chip_gen: v6e
topology: v6e:2x2x1
jax: 0.10.0
libtpu: 0.0.40
codegen_flags: <defaults>
</compile_context>

<pallas_src>
import functools
import math

import jax
import jax.numpy as jnp
from jax.experimental import pallas as pl
from jax.experimental.pallas import tpu as pltpu


def _round_up(a: int, m: int) -> int:
    return ((a + m - 1) // m) * m


def _concat_mlp_kernel(x_ref, wx_ref, w1h_ref, w2h_ref,
                       b0_ref, b1_ref, b2_ref, out_ref,
                       *, f0: int, f1: int, f2: int, final_vpu: bool):
    x = x_ref[...]                                   # (tm, in_f) f32
    xb = x.astype(jnp.bfloat16)

    # Single packed x-side MXU pass (N padded to a multiple of 128 -> lane
    # dense).  Lane ranges: [0:f0) layer-0 pre-act, [f0:f0+f1) x-contribution
    # to layer 1, [f0+f1:f0+f1+f2) x-contribution to the output layer.
    p = jnp.dot(xb, wx_ref[...], preferred_element_type=jnp.float32)  # (tm, Np)

    # Layer 0: Linear(in_f, f0) + ReLU (bias/ReLU in f32 on the VPU).
    h0 = jnp.maximum(p[:, :f0] + b0_ref[...], 0.0)                    # (tm, f0)

    # Layer 1: Linear(f0 + in_f, f1) on concat([h0, x]) + ReLU.
    # The x-half is already in `p`; only the h-half needs an MXU pass.
    h1 = jnp.dot(h0.astype(jnp.bfloat16), w1h_ref[...],
                 preferred_element_type=jnp.float32)
    h1 = jnp.maximum(h1 + p[:, f0:f0 + f1] + b1_ref[...], 0.0)        # (tm, f1)

    # Layer 2: Linear(f1 + in_f, f2) on concat([h1, x]), no activation.
    p2x = p[:, f0 + f1:f0 + f1 + f2]                                  # (tm, f2)
    if final_vpu:
        # f2 == 1: keep the degenerate N=1 matmul off the MXU -> f32 VPU
        # multiply with the broadcast (1, f1) weight row + XLU lane reduce.
        out = (jnp.sum(h1 * w2h_ref[...], axis=-1, keepdims=True)
               + p2x + b2_ref[...])
    else:
        out = (jnp.dot(h1.astype(jnp.bfloat16), w2h_ref[...],
                       preferred_element_type=jnp.float32)
               + p2x + b2_ref[...])

    out_ref[...] = out.astype(out_ref.dtype)


def prepare_params(params, in_features):
    """One-time preprocessing (keeps transpose/slice/pack/cast off the hot path):
    transpose weights to (in, out), split the concat-weights into h-part /
    x-part, column-pack ALL x-side weights into one bf16 matrix padded to a
    multiple of 128 lanes, reshape biases to (1, f)."""
    w0t = params["w0"].T.astype(jnp.float32)          # (in_f, f0)
    f0 = w0t.shape[1]
    b0 = params["b0"][None, :].astype(jnp.float32)    # (1, f0)

    w1t = params["w1"].T.astype(jnp.float32)          # (f0 + in_f, f1)
    f1 = w1t.shape[1]
    w1h, w1x = w1t[:f0], w1t[f0:]                     # (f0, f1), (in_f, f1)
    b1 = params["b1"][None, :].astype(jnp.float32)    # (1, f1)

    w2t = params["w2"].T.astype(jnp.float32)          # (f1 + in_f, f2)
    f2 = w2t.shape[1]
    w2h, w2x = w2t[:f1], w2t[f1:]                     # (f1, f2), (in_f, f2)
    b2 = params["b2"][None, :].astype(jnp.float32)    # (1, f2)

    # Column-pack every weight that multiplies x into one lane-dense matrix.
    wx = jnp.concatenate([w0t, w1x, w2x], axis=1)     # (in_f, f0 + f1 + f2)
    n_packed = wx.shape[1]
    n_pad = _round_up(n_packed, 128) - n_packed
    if n_pad:
        wx = jnp.pad(wx, ((0, 0), (0, n_pad)))
    wx = wx.astype(jnp.bfloat16)                      # bf16: MXU-native

    w1h = w1h.astype(jnp.bfloat16)
    final_vpu = (f2 == 1)
    if final_vpu:
        w2h_k = w2h.T.astype(jnp.float32)             # (1, f1) row, f32 VPU path
    else:
        w2h_k = w2h.astype(jnp.bfloat16)              # (f1, f2) MXU path

    return dict(wx=wx, w1h=w1h, w2h=w2h_k,
                b0=b0, b1=b1, b2=b2,
                dims=(int(in_features), int(f0), int(f1), int(f2)),
                final_vpu=final_vpu)


def concat_mlp_forward(x, prep, *, block_rows=1024):
    """x: (..., in_features) f32.  prep: output of prepare_params."""
    in_f, f0, f1, f2 = prep["dims"]
    assert x.shape[-1] == in_f
    x2 = x.reshape(-1, in_f).astype(jnp.float32)
    B = x2.shape[0]

    # Row tile: multiple of 128 (lane/sublane friendly for every block), capped
    # at ceil(B/2) so grid >= 2 (v7x batch sharding), capped at block_rows
    # (v5e vreg pressure / spill control).
    half = _round_up(max(-(-B // 2), 1), 128)
    tm = max(128, min(_round_up(block_rows, 128), half))
    Bp = _round_up(B, tm)
    if Bp != B:
        x2 = jnp.pad(x2, ((0, Bp - B), (0, 0)))
    grid = (Bp // tm,)

    def resident(arr):
        # Same block every grid step -> fetched once, stays VMEM-resident.
        return pl.BlockSpec(arr.shape, lambda i: (0, 0))

    in_specs = [
        pl.BlockSpec((tm, in_f), lambda i: (i, 0)),   # x: tiled over batch
        resident(prep["wx"]),
        resident(prep["w1h"]),
        resident(prep["w2h"]),
        resident(prep["b0"]),
        resident(prep["b1"]),
        resident(prep["b2"]),
    ]
    out_specs = pl.BlockSpec((tm, f2), lambda i: (i, 0))

    n_packed = f0 + f1 + f2
    flops = 2 * Bp * (in_f * n_packed + f0 * f1 + f1 * f2)
    weight_bytes = (prep["wx"].size * 2 + prep["w1h"].size * 2
                    + prep["w2h"].size * prep["w2h"].dtype.itemsize
                    + 4 * (f0 + f1 + f2))
    cost = pl.CostEstimate(flops=flops, transcendentals=0,
                           bytes_accessed=4 * Bp * (in_f + f2) + weight_bytes)

    kernel = functools.partial(_concat_mlp_kernel, f0=f0, f1=f1, f2=f2,
                               final_vpu=prep["final_vpu"])

    out = pl.pallas_call(
        kernel,
        out_shape=jax.ShapeDtypeStruct((Bp, f2), jnp.float32),
        grid=grid,
        in_specs=in_specs,
        out_specs=out_specs,
        compiler_params=pltpu.CompilerParams(
            dimension_semantics=("parallel",),          # batch axis independent
            vmem_limit_bytes=32 * 1024 * 1024,          # explicit, safe on v5e/v6e/v7x
        ),
        cost_estimate=cost,
    )(x2, prep["wx"], prep["w1h"], prep["w2h"],
      prep["b0"], prep["b1"], prep["b2"])

    out = out[:B].reshape(x.shape[:-1] + (f2,))
    # .squeeze() glue (matches torch's x.squeeze())
    return {"out": jnp.squeeze(out)}


def init_params(key, in_features, layers):
    """Deterministic PyTorch-Linear-style init (uniform(-1/sqrt(fan_in), ...))."""
    params = {}
    first_f = in_features
    in_f = in_features
    for i, f in enumerate(layers):
        fan_in = in_f + (0 if i == 0 else first_f)
        bound = 1.0 / math.sqrt(fan_in)
        key, kw, kb = jax.random.split(key, 3)
        params[f"w{i}"] = jax.random.uniform(kw, (f, fan_in), jnp.float32, -bound, bound)
        params[f"b{i}"] = jax.random.uniform(kb, (f,), jnp.float32, -bound, bound)
        in_f = f
    return params


def reference_forward(x, params):
    """Pure-JAX f32 reference mirroring the PyTorch loop literally (with concat)."""
    hp = jax.lax.Precision.HIGHEST
    h = jnp.maximum(jnp.dot(x, params["w0"].T, precision=hp) + params["b0"], 0.0)
    h = jnp.maximum(jnp.dot(jnp.concatenate([h, x], -1), params["w1"].T,
                            precision=hp) + params["b1"], 0.0)
    out = jnp.dot(jnp.concatenate([h, x], -1), params["w2"].T,
                  precision=hp) + params["b2"]
    return jnp.squeeze(out)


if __name__ == "__main__":
    batch = 512
    in_features = 32
    layers = [64, 48, 1]   # last layer width 1 -> squeeze gives (batch,)

    key = jax.random.PRNGKey(0)
    key, kx = jax.random.split(key)
    x = jax.random.normal(kx, (batch, in_features), jnp.float32)
    params = init_params(key, in_features, layers)

    prep = prepare_params(params, in_features)   # one-time preprocessing / packing
    result = concat_mlp_forward(x, prep)         # tm=256 -> grid=(2,): both v7x cores busy
    out = jax.block_until_ready(result["out"])

    ref = reference_forward(x, params)
    assert out.shape == ref.shape, (out.shape, ref.shape)
    # bf16 MXU operands (f32 accumulation) vs f32 HIGHEST reference -> bf16-level tolerance.
    assert jnp.allclose(out, ref, atol=5e-2, rtol=5e-2), \
        float(jnp.max(jnp.abs(out - ref)))

    print("KERNEL_OK")
</pallas_src>

<mosaic_0001>
module attributes {stable_mosaic.version = 11 : i64} {
  func.func @_concat_mlp_kernel(%arg0: i32, %arg1: memref<256x32xf32, #tpu.memory_space<vmem>>, %arg2: memref<32x128xbf16, #tpu.memory_space<vmem>>, %arg3: memref<64x48xbf16, #tpu.memory_space<vmem>>, %arg4: memref<1x48xf32, #tpu.memory_space<vmem>>, %arg5: memref<1x64xf32, #tpu.memory_space<vmem>>, %arg6: memref<1x48xf32, #tpu.memory_space<vmem>>, %arg7: memref<1x1xf32, #tpu.memory_space<vmem>>, %arg8: memref<256x1xf32, #tpu.memory_space<vmem>>) attributes {dimension_semantics = [#tpu.dimension_semantics<parallel>], iteration_bounds = array<i64: 2>, scalar_prefetch = 0 : i64, scratch_operands = 0 : i64, tpu.core_type = #tpu.core_type<tc>, window_params = [{transform_indices = @transform_0, window_bounds = array<i64: 256, 32>}, {pipeline_mode = #tpu.pipeline_mode<synchronous>, transform_indices = @transform_1, window_bounds = array<i64: 32, 128>}, {pipeline_mode = #tpu.pipeline_mode<synchronous>, transform_indices = @transform_2, window_bounds = array<i64: 64, 48>}, {pipeline_mode = #tpu.pipeline_mode<synchronous>, transform_indices = @transform_3, window_bounds = array<i64: 1, 48>}, {pipeline_mode = #tpu.pipeline_mode<synchronous>, transform_indices = @transform_4, window_bounds = array<i64: 1, 64>}, {pipeline_mode = #tpu.pipeline_mode<synchronous>, transform_indices = @transform_5, window_bounds = array<i64: 1, 48>}, {pipeline_mode = #tpu.pipeline_mode<synchronous>, transform_indices = @transform_6, window_bounds = array<i64: 1, 1>}, {transform_indices = @transform_7, window_bounds = array<i64: 256, 1>}]} {
    %c0 = arith.constant 0 : index
    %c0_0 = arith.constant 0 : index
    %0 = vector.load %arg1[%c0, %c0_0] : memref<256x32xf32, #tpu.memory_space<vmem>>, vector<256x32xf32>
    %1 = arith.truncf %0 : vector<256x32xf32> to vector<256x32xbf16>
    %c0_1 = arith.constant 0 : index
    %c0_2 = arith.constant 0 : index
    %2 = vector.load %arg2[%c0_1, %c0_2] : memref<32x128xbf16, #tpu.memory_space<vmem>>, vector<32x128xbf16>
    %cst = arith.constant dense<0.000000e+00> : vector<256x128xf32>
    %3 = tpu.matmul %1, %2, %cst {dimension_numbers = #tpu.dot_dimension_numbers<[1], [0], [0], [1], [0, 0, 1, 1], [], []>} : vector<256x32xbf16>, vector<32x128xbf16>, vector<256x128xf32> -> vector<256x128xf32>
    %4 = vector.extract_strided_slice %3 {offsets = [0, 0], sizes = [256, 64], strides = [1, 1]} : vector<256x128xf32> to vector<256x64xf32>
    %c0_3 = arith.constant 0 : index
    %c0_4 = arith.constant 0 : index
    %5 = vector.load %arg5[%c0_3, %c0_4] : memref<1x64xf32, #tpu.memory_space<vmem>>, vector<1x64xf32>
    %6 = vector.broadcast %5 : vector<1x64xf32> to vector<256x64xf32>
    %7 = arith.addf %4, %6 : vector<256x64xf32>
    %cst_5 = arith.constant 0.000000e+00 : f32
    %8 = vector.broadcast %cst_5 : f32 to vector<256x64xf32>
    %9 = arith.maximumf %7, %8 : vector<256x64xf32>
    %10 = arith.truncf %9 : vector<256x64xf32> to vector<256x64xbf16>
    %c0_6 = arith.constant 0 : index
    %c0_7 = arith.constant 0 : index
    %11 = vector.load %arg3[%c0_6, %c0_7] : memref<64x48xbf16, #tpu.memory_space<vmem>>, vector<64x48xbf16>
    %cst_8 = arith.constant dense<0.000000e+00> : vector<256x48xf32>
    %12 = tpu.matmul %10, %11, %cst_8 {dimension_numbers = #tpu.dot_dimension_numbers<[1], [0], [0], [1], [0, 0, 1, 1], [], []>} : vector<256x64xbf16>, vector<64x48xbf16>, vector<256x48xf32> -> vector<256x48xf32>
    %13 = vector.extract_strided_slice %3 {offsets = [0, 64], sizes = [256, 48], strides = [1, 1]} : vector<256x128xf32> to vector<256x48xf32>
    %14 = arith.addf %12, %13 : vector<256x48xf32>
    %c0_9 = arith.constant 0 : index
    %c0_10 = arith.constant 0 : index
    %15 = vector.load %arg6[%c0_9, %c0_10] : memref<1x48xf32, #tpu.memory_space<vmem>>, vector<1x48xf32>
    %16 = vector.broadcast %15 : vector<1x48xf32> to vector<256x48xf32>
    %17 = arith.addf %14, %16 : vector<256x48xf32>
    %cst_11 = arith.constant 0.000000e+00 : f32
    %18 = vector.broadcast %cst_11 : f32 to vector<256x48xf32>
    %19 = arith.maximumf %17, %18 : vector<256x48xf32>
    %20 = vector.extract_strided_slice %3 {offsets = [0, 112], sizes = [256, 1], strides = [1, 1]} : vector<256x128xf32> to vector<256x1xf32>
    %c0_12 = arith.constant 0 : index
    %c0_13 = arith.constant 0 : index
    %21 = vector.load %arg4[%c0_12, %c0_13] : memref<1x48xf32, #tpu.memory_space<vmem>>, vector<1x48xf32>
    %22 = vector.broadcast %21 : vector<1x48xf32> to vector<256x48xf32>
    %23 = arith.mulf %19, %22 : vector<256x48xf32>
    %cst_14 = arith.constant dense<0.000000e+00> : vector<256xf32>
    %24 = vector.multi_reduction <add>, %23, %cst_14 [1] : vector<256x48xf32> to vector<256xf32>
    %25 = vector.shape_cast %24 : vector<256xf32> to vector<256x1xf32>
    %26 = arith.addf %25, %20 : vector<256x1xf32>
    %c0_15 = arith.constant 0 : index
    %c0_16 = arith.constant 0 : index
    %27 = vector.load %arg7[%c0_15, %c0_16] : memref<1x1xf32, #tpu.memory_space<vmem>>, vector<1x1xf32>
    %28 = vector.broadcast %27 : vector<1x1xf32> to vector<256x1xf32>
    %29 = arith.addf %26, %28 : vector<256x1xf32>
    %c0_17 = arith.constant 0 : index
    %c0_18 = arith.constant 0 : index
    %30 = vector.load %arg8[%c0_17, %c0_18] : memref<256x1xf32, #tpu.memory_space<vmem>>, vector<256x1xf32>
    tpu.vector_store %arg8[%c0_17, %c0_18], %29 {strides = array<i32>} : memref<256x1xf32, #tpu.memory_space<vmem>>, vector<256x1xf32>,
    return
  }
  func.func @transform_0(%arg0: i32) -> (i32, i32) {
    %c0_i32 = arith.constant 0 : i32
    %c0_i32_0 = arith.constant 0 : i32
    return %arg0, %c0_i32 : i32, i32
  }
  func.func @transform_1(%arg0: i32) -> (i32, i32) {
    %c0_i32 = arith.constant 0 : i32
    %c0_i32_0 = arith.constant 0 : i32
    %c0_i32_1 = arith.constant 0 : i32
    return %c0_i32, %c0_i32_0 : i32, i32
  }
  func.func @transform_2(%arg0: i32) -> (i32, i32) {
    %c0_i32 = arith.constant 0 : i32
    %c0_i32_0 = arith.constant 0 : i32
    %c0_i32_1 = arith.constant 0 : i32
    return %c0_i32, %c0_i32_0 : i32, i32
  }
  func.func @transform_3(%arg0: i32) -> (i32, i32) {
    %c0_i32 = arith.constant 0 : i32
    %c0_i32_0 = arith.constant 0 : i32
    %c0_i32_1 = arith.constant 0 : i32
    return %c0_i32, %c0_i32_0 : i32, i32
  }
  func.func @transform_4(%arg0: i32) -> (i32, i32) {
    %c0_i32 = arith.constant 0 : i32
    %c0_i32_0 = arith.constant 0 : i32
    %c0_i32_1 = arith.constant 0 : i32
    return %c0_i32, %c0_i32_0 : i32, i32
  }
  func.func @transform_5(%arg0: i32) -> (i32, i32) {
    %c0_i32 = arith.constant 0 : i32
    %c0_i32_0 = arith.constant 0 : i32
    %c0_i32_1 = arith.constant 0 : i32
    return %c0_i32, %c0_i32_0 : i32, i32
  }
  func.func @transform_6(%arg0: i32) -> (i32, i32) {
    %c0_i32 = arith.constant 0 : i32
    %c0_i32_0 = arith.constant 0 : i32
    %c0_i32_1 = arith.constant 0 : i32
    return %c0_i32, %c0_i32_0 : i32, i32
  }
  func.func @transform_7(%arg0: i32) -> (i32, i32) {
    %c0_i32 = arith.constant 0 : i32
    %c0_i32_0 = arith.constant 0 : i32
    return %arg0, %c0_i32 : i32, i32
  }
}

</mosaic_0001>

<llo_original>
// kernel: tpu_custom_call.1
$region0: #{tpu_custom_call.1}
  #allocation0 [shape = 'u32[]', space=smem, size = 0x4, offset = 0x4, fixed_abs, tag = 'smem constant byte address 0x4 - core index']
  #allocation1 [shape = 'u32[144,128]{1,0:T(1,128)}', space=vmem, size = 0x12000, scoped, tag = 'internal scratch']
  #allocation2 [shape = 'f32[1,1]{1,0:T(1,128)S(1)}', space=vmem, size = 0x200, scoped, tag = 'scoped memory for tpu_custom_call.1']
  %s0 = inlined_call_operand.vmem [shape: f32[512,32], index: 0, kind: input, shape index: {}]
  %s1 = inlined_call_operand.vmem [shape: bf16[32,128], index: 1, kind: input, shape index: {}]
  %s2 = inlined_call_operand.vmem [shape: bf16[64,48], index: 2, kind: input, shape index: {}]
  %s3 = inlined_call_operand.vmem [shape: f32[1,48], index: 3, kind: input, shape index: {}]
  %s4 = inlined_call_operand.vmem [shape: f32[1,64], index: 4, kind: input, shape index: {}]
  %s5 = inlined_call_operand.vmem [shape: f32[1,48], index: 5, kind: input, shape index: {}]
  %s6 = inlined_call_operand.<no memory space> [shape: f32[1,1], index: 6, kind: input, shape index: {}]
  %s7 = inlined_call_operand.vmem [shape: f32[512,1], index: 7, kind: output, shape index: {}]
  %s8 = sld [smem:[#allocation0]]
  $region61: #{tpu_custom_call.1} parent=0
    _
  %s10 = ssub.s32 1, %s8
  %s11 = scalar_select 0, %s10, %s8
  %v12 = vstv %s6
  %13 = vst [vmem:[#allocation2] sm:$0x1] %v12
  loop: start=0, step=1, limit=4
  $region2: #{tpu_custom_call.1} parent=0 // loop_pre_header
    _
  $region3: #{tpu_custom_call.1} parent=0 // loop_header
    %s15 = sphi 0, %s19
    %p16 = scmp.ge.s32.totalorder %s15, 4
    %s25 = sphi 0, %s27
    %s28 = sphi 0, %s25
    %s29 = sphi 0, %s28
    %s45 = sphi 0, %s29
    %s49 = sphi 0, %s49
    %s51 = sphi 0, %s49
    %s52 = sphi 0, %s51
    %s66 = sphi 0, %s52
    %s70 = sphi 0, %s70
    %s72 = sphi 0, %s70
    %s73 = sphi 0, %s72
    %s87 = sphi 0, %s73
    %s91 = sphi 0, %s91
    %s93 = sphi 0, %s91
    %s94 = sphi 0, %s93
    %s108 = sphi 0, %s94
    %s112 = sphi 0, %s112
    %s114 = sphi 0, %s112
    %s115 = sphi 0, %s114
    %s129 = sphi 0, %s115
    %s133 = sphi 0, %s133
    %s135 = sphi 0, %s133
    %s136 = sphi 0, %s135
    %s150 = sphi 0, %s136
    %s154 = sphi 0, %s154
    %s156 = sphi 0, %s154
    %s157 = sphi 0, %s156
    %s171 = sphi 0, %s157
    %s177 = sphi 0, %s179
    %s180 = sphi 0, %s177
    %s181 = sphi 0, %s180
    %s197 = sphi 0, %s181
  $region4: #{tpu_custom_call.1} parent=0 // loop_header_branch
    %18 = sbr.rel (%p16) target = $region8
  $region5: #{tpu_custom_call.1} parent=0 // loop_body
    %s20 = ssub.s32 %s15, 1
    %s21 = ssub.s32 %s15, 2
    %s22 = sadd.s32 %s15, 1
    %s23 = ssub.s32 %s15, %s22
    %p24 = scmp.eq.s32.totalorder %s23, 0
    %s26 = sadd.s32 %s25, 1
    %s27 = scalar_select %p24, %s25, %s26
    %p30 = pneg %p24
    %p31 = scmp.eq.s32.totalorder %s15, 1
    %p32 = por %p30, %p31
    %p33 = scmp.ne.s32.totalorder %s25, %s28
    %p34 = scmp.eq.s32.totalorder %s15, 0
    %p35 = por %p33, %p34
    %p36 = scmp.ne.s32.totalorder %s25, %s28
    %p37 = scmp.eq.s32.totalorder %s20, 1
    %p38 = por %p36, %p37
    %p39 = scmp.ne.s32.totalorder %s28, %s29
    %p40 = scmp.eq.s32.totalorder %s20, 0
    %p41 = por %p39, %p40
    %p42 = scmp.ne.s32.totalorder %s28, %s29
    %p43 = scmp.eq.s32.totalorder %s21, 1
    %p44 = por %p42, %p43
    %p46 = scmp.ne.s32.totalorder %s29, %s45
    %p47 = scmp.eq.s32.totalorder %s21, 0
    %p48 = por %p46, %p47
    %s50 = sadd.s32 %s49, 1
    %p53 = scmp.eq.s32.totalorder %s15, 1
    %p54 = scmp.ne.s32.totalorder %s49, %s51
    %p55 = scmp.eq.s32.totalorder %s15, 0
    %p56 = por %p54, %p55
    %p57 = scmp.ne.s32.totalorder %s49, %s51
    %p58 = scmp.eq.s32.totalorder %s20, 1
    %p59 = por %p57, %p58
    %p60 = scmp.ne.s32.totalorder %s51, %s52
    %p61 = scmp.eq.s32.totalorder %s20, 0
    %p62 = por %p60, %p61
    %p63 = scmp.ne.s32.totalorder %s51, %s52
    %p64 = scmp.eq.s32.totalorder %s21, 1
    %p65 = por %p63, %p64
    %p67 = scmp.ne.s32.totalorder %s52, %s66
    %p68 = scmp.eq.s32.totalorder %s21, 0
    %p69 = por %p67, %p68
    %s71 = sadd.s32 %s70, 1
    %p74 = scmp.eq.s32.totalorder %s15, 1
    %p75 = scmp.ne.s32.totalorder %s70, %s72
    %p76 = scmp.eq.s32.totalorder %s15, 0
    %p77 = por %p75, %p76
    %p78 = scmp.ne.s32.totalorder %s70, %s72
    %p79 = scmp.eq.s32.totalorder %s20, 1
    %p80 = por %p78, %p79
    %p81 = scmp.ne.s32.totalorder %s72, %s73
    %p82 = scmp.eq.s32.totalorder %s20, 0
    %p83 = por %p81, %p82
    %p84 = scmp.ne.s32.totalorder %s72, %s73
    %p85 = scmp.eq.s32.totalorder %s21, 1
    %p86 = por %p84, %p85
    %p88 = scmp.ne.s32.totalorder %s73, %s87
    %p89 = scmp.eq.s32.totalorder %s21, 0
    %p90 = por %p88, %p89
    %s92 = sadd.s32 %s91, 1
    %p95 = scmp.eq.s32.totalorder %s15, 1
    %p96 = scmp.ne.s32.totalorder %s91, %s93
    %p97 = scmp.eq.s32.totalorder %s15, 0
    %p98 = por %p96, %p97
    %p99 = scmp.ne.s32.totalorder %s91, %s93
    %p100 = scmp.eq.s32.totalorder %s20, 1
    %p101 = por %p99, %p100
    %p102 = scmp.ne.s32.totalorder %s93, %s94
    %p103 = scmp.eq.s32.totalorder %s20, 0
    %p104 = por %p102, %p103
    %p105 = scmp.ne.s32.totalorder %s93, %s94
    %p106 = scmp.eq.s32.totalorder %s21, 1
    %p107 = por %p105, %p106
    %p109 = scmp.ne.s32.totalorder %s94, %s108
    %p110 = scmp.eq.s32.totalorder %s21, 0
    %p111 = por %p109, %p110
    %s113 = sadd.s32 %s112, 1
    %p116 = scmp.eq.s32.totalorder %s15, 1
    %p117 = scmp.ne.s32.totalorder %s112, %s114
    %p118 = scmp.eq.s32.totalorder %s15, 0
    %p119 = por %p117, %p118
    %p120 = scmp.ne.s32.totalorder %s112, %s114
    %p121 = scmp.eq.s32.totalorder %s20, 1
    %p122 = por %p120, %p121
    %p123 = scmp.ne.s32.totalorder %s114, %s115
    %p124 = scmp.eq.s32.totalorder %s20, 0
    %p125 = por %p123, %p124
    %p126 = scmp.ne.s32.totalorder %s114, %s115
    %p127 = scmp.eq.s32.totalorder %s21, 1
    %p128 = por %p126, %p127
    %p130 = scmp.ne.s32.totalorder %s115, %s129
    %p131 = scmp.eq.s32.totalorder %s21, 0
    %p132 = por %p130, %p131
    %s134 = sadd.s32 %s133, 1
    %p137 = scmp.eq.s32.totalorder %s15, 1
    %p138 = scmp.ne.s32.totalorder %s133, %s135
    %p139 = scmp.eq.s32.totalorder %s15, 0
    %p140 = por %p138, %p139
    %p141 = scmp.ne.s32.totalorder %s133, %s135
    %p142 = scmp.eq.s32.totalorder %s20, 1
    %p143 = por %p141, %p142
    %p144 = scmp.ne.s32.totalorder %s135, %s136
    %p145 = scmp.eq.s32.totalorder %s20, 0
    %p146 = por %p144, %p145
    %p147 = scmp.ne.s32.totalorder %s135, %s136
    %p148 = scmp.eq.s32.totalorder %s21, 1
    %p149 = por %p147, %p148
    %p151 = scmp.ne.s32.totalorder %s136, %s150
    %p152 = scmp.eq.s32.totalorder %s21, 0
    %p153 = por %p151, %p152
    %s155 = sadd.s32 %s154, 1
    %p158 = scmp.eq.s32.totalorder %s15, 1
    %p159 = scmp.ne.s32.totalorder %s154, %s156
    %p160 = scmp.eq.s32.totalorder %s15, 0
    %p161 = por %p159, %p160
    %p162 = scmp.ne.s32.totalorder %s154, %s156
    %p163 = scmp.eq.s32.totalorder %s20, 1
    %p164 = por %p162, %p163
    %p165 = scmp.ne.s32.totalorder %s156, %s157
    %p166 = scmp.eq.s32.totalorder %s20, 0
    %p167 = por %p165, %p166
    %p168 = scmp.ne.s32.totalorder %s156, %s157
    %p169 = scmp.eq.s32.totalorder %s21, 1
    %p170 = por %p168, %p169
    %p172 = scmp.ne.s32.totalorder %s157, %s171
    %p173 = scmp.eq.s32.totalorder %s21, 0
    %p174 = por %p172, %p173
    %s175 = ssub.s32 %s15, %s22
    %p176 = scmp.eq.s32.totalorder %s175, 0
    %s178 = sadd.s32 %s177, 1
    %s179 = scalar_select %p176, %s177, %s178
    %p182 = pneg %p176
    %p183 = scmp.eq.s32.totalorder %s15, 1
    %p184 = por %p182, %p183
    %p185 = scmp.ne.s32.totalorder %s177, %s180
    %p186 = scmp.eq.s32.totalorder %s15, 0
    %p187 = por %p185, %p186
    %p188 = scmp.ne.s32.totalorder %s177, %s180
    %p189 = scmp.eq.s32.totalorder %s20, 1
    %p190 = por %p188, %p189
    %p191 = scmp.ne.s32.totalorder %s180, %s181
    %p192 = scmp.eq.s32.totalorder %s20, 0
    %p193 = por %p191, %p192
    %p194 = scmp.ne.s32.totalorder %s180, %s181
    %p195 = scmp.eq.s32.totalorder %s21, 1
    %p196 = por %p194, %p195
    %p198 = scmp.ne.s32.totalorder %s181, %s197
    %p199 = scmp.eq.s32.totalorder %s21, 0
    %p200 = por %p198, %p199
    %p201 = scmp.le.s32.totalorder 1, %s15
    %p202 = scmp.lt.s32.totalorder %s15, 3
    %p203 = pnand %p201, %p202
    %p204 = pneg %p203
    // Predicated region
    $region9: #{tpu_custom_call.1} parent=5 // pred_check
      _
    $region10: #{tpu_custom_call.1} parent=5 // pred_check_branch
      %206 = sbr.rel (%p203) target = $region12
    $region11: #{tpu_custom_call.1} parent=5 // pred_region
      %s207 = ssub.s32 %s15, 1
      // Predicated region
      $region13: #{tpu_custom_call.1} parent=11 // pred_check
        %p208 = pneg %p62
      $region14: #{tpu_custom_call.1} parent=11 // pred_check_branch
        %210 = sbr.rel (%p208) target = $region16
      $region15: #{tpu_custom_call.1} parent=11 // pred_region
        _
      $region16: #{tpu_custom_call.1} parent=11 // pred_fallthru
        _
      // Predicated region
      $region17: #{tpu_custom_call.1} parent=11 // pred_check
        %p211 = pneg %p83
      $region18: #{tpu_custom_call.1} parent=11 // pred_check_branch
        %213 = sbr.rel (%p211) target = $region20
      $region19: #{tpu_custom_call.1} parent=11 // pred_region
        _
      $region20: #{tpu_custom_call.1} parent=11 // pred_fallthru
        _
      // Predicated region
      $region21: #{tpu_custom_call.1} parent=11 // pred_check
        %p214 = pneg %p104
      $region22: #{tpu_custom_call.1} parent=11 // pred_check_branch
        %216 = sbr.rel (%p214) target = $region24
      $region23: #{tpu_custom_call.1} parent=11 // pred_region
        _
      $region24: #{tpu_custom_call.1} parent=11 // pred_fallthru
        _
      // Predicated region
      $region25: #{tpu_custom_call.1} parent=11 // pred_check
        %p217 = pneg %p125
      $region26: #{tpu_custom_call.1} parent=11 // pred_check_branch
        %219 = sbr.rel (%p217) target = $region28
      $region27: #{tpu_custom_call.1} parent=11 // pred_region
        _
      $region28: #{tpu_custom_call.1} parent=11 // pred_fallthru
        _
      // Predicated region
      $region29: #{tpu_custom_call.1} parent=11 // pred_check
        %p220 = pneg %p146
      $region30: #{tpu_custom_call.1} parent=11 // pred_check_branch
        %222 = sbr.rel (%p220) target = $region32
      $region31: #{tpu_custom_call.1} parent=11 // pred_region
        _
      $region32: #{tpu_custom_call.1} parent=11 // pred_fallthru
        _
      // Predicated region
      $region33: #{tpu_custom_call.1} parent=11 // pred_check
        %p223 = pneg %p167
      $region34: #{tpu_custom_call.1} parent=11 // pred_check_branch
        %225 = sbr.rel (%p223) target = $region36
      $region35: #{tpu_custom_call.1} parent=11 // pred_region
        _
      $region36: #{tpu_custom_call.1} parent=11 // pred_fallthru
        _
    $region12: #{tpu_custom_call.1} parent=5 // pred_fallthru
      _
    %p226 = scmp.lt.s32.totalorder %s15, 2
    // Predicated region
    $region37: #{tpu_custom_call.1} parent=5 // pred_check
      %p227 = pneg %p226
    $region38: #{tpu_custom_call.1} parent=5 // pred_check_branch
      %229 = sbr.rel (%p227) target = $region40
    $region39: #{tpu_custom_call.1} parent=5 // pred_region
      // Predicated region
      $region41: #{tpu_custom_call.1} parent=39 // pred_check
        %p230 = pneg %p35
      $region42: #{tpu_custom_call.1} parent=39 // pred_check_branch
        %232 = sbr.rel (%p230) target = $region44
      $region43: #{tpu_custom_call.1} parent=39 // pred_region
        %s233 = smul.u32 32, %s15
        %p234 = scmp.lt.s32.totalorder %s233, 63
        %s235 = scalar_select %p234, %s233, 63
        %s236 = smul.addr %s235, 8
        %s237 = scalar_lea.vmem %s0, %s236
        %s238 = smul.u32 32, %s15
      $region44: #{tpu_custom_call.1} parent=39 // pred_fallthru
        _
    $region40: #{tpu_custom_call.1} parent=5 // pred_fallthru
      _
    %p239 = scmp.le.s32.totalorder 1, %s15
    %p240 = scmp.lt.s32.totalorder %s15, 3
    %p241 = pnand %p239, %p240
    %p242 = pneg %p241
    // Predicated region
    $region45: #{tpu_custom_call.1} parent=5 // pred_check
      _
    $region46: #{tpu_custom_call.1} parent=5 // pred_check_branch
      %244 = sbr.rel (%p241) target = $region48
    $region47: #{tpu_custom_call.1} parent=5 // pred_region
      %s245 = ssub.s32 %s15, 1
      %s246 = smul.u32 32, %s20
      %p247 = scmp.lt.s32.totalorder %s246, 63
      %s248 = scalar_select %p247, %s246, 63
      %s249 = smul.addr %s248, 8
      %s250 = scalar_lea.vmem %s0, %s249
      %p251 = pneg %p41
      %p252 = pneg %p38
      %p253 = pneg %p62
      %p254 = pneg %p59
      %p255 = pneg %p83
      %p256 = pneg %p80
      %p257 = pneg %p104
      %p258 = pneg %p101
      %p259 = pneg %p125
      %p260 = pneg %p122
      %p261 = pneg %p146
      %p262 = pneg %p143
      %p263 = pneg %p167
      %p264 = pneg %p164
      %p265 = pneg %p193
      %p266 = pneg %p190
      %s267 = smul.u32 32, %s20
      %p268 = scmp.lt.s32.totalorder %s267, 63
      %s269 = scalar_select %p268, %s267, 63
      %s270 = smul.addr %s269, 8
      %s271 = scalar_lea.vmem %s7, %s270
      %s272 = smul.u32 32, %s20
      %p273 = scmp.lt.s32.totalorder %s272, 63
      %s274 = scalar_select %p273, %s272, 63
      %s275 = smul.addr %s274, 8
      %s276 = scalar_lea.vmem %s0, %s275
      %s277 = smul.u32 32, %s20
      %s278 = smul.u32 32, %s20
      %p279 = scmp.lt.s32.totalorder %s278, 63
      %s280 = scalar_select %p279, %s278, 63
      %s281 = smul.addr %s280, 8
      %s282 = scalar_lea.vmem %s7, %s281
      %s283 = smul.u32 32, %s20
      %v285 = vld [vmem:[%s276] sm:$0xff]
      %v286 = vld [vmem:[%s276 + $0x8] sm:$0xff]
      %v287 = vld [vmem:[%s276 + $0x10] sm:$0xff]
      %v288 = vld [vmem:[%s276 + $0x18] sm:$0xff]
      %v289 = vld [vmem:[%s276 + $0x20] sm:$0xff]
      %v290 = vld [vmem:[%s276 + $0x28] sm:$0xff]
      %v291 = vld [vmem:[%s276 + $0x30] sm:$0xff]
      %v292 = vld [vmem:[%s276 + $0x38] sm:$0xff]
      %v293 = vld [vmem:[%s276 + $0x40] sm:$0xff]
      %v294 = vld [vmem:[%s276 + $0x48] sm:$0xff]
      %v295 = vld [vmem:[%s276 + $0x50] sm:$0xff]
      %v296 = vld [vmem:[%s276 + $0x58] sm:$0xff]
      %v297 = vld [vmem:[%s276 + $0x60] sm:$0xff]
      %v298 = vld [vmem:[%s276 + $0x68] sm:$0xff]
      %v299 = vld [vmem:[%s276 + $0x70] sm:$0xff]
      %v300 = vld [vmem:[%s276 + $0x78] sm:$0xff]
      %v301 = vld [vmem:[%s276 + $0x80] sm:$0xff]
      %v302 = vld [vmem:[%s276 + $0x88] sm:$0xff]
      %v303 = vld [vmem:[%s276 + $0x90] sm:$0xff]
      %v304 = vld [vmem:[%s276 + $0x98] sm:$0xff]
      %v305 = vld [vmem:[%s276 + $0xa0] sm:$0xff]
      %v306 = vld [vmem:[%s276 + $0xa8] sm:$0xff]
      %v307 = vld [vmem:[%s276 + $0xb0] sm:$0xff]
      %v308 = vld [vmem:[%s276 + $0xb8] sm:$0xff]
      %v309 = vld [vmem:[%s276 + $0xc0] sm:$0xff]
      %v310 = vld [vmem:[%s276 + $0xc8] sm:$0xff]
      %v311 = vld [vmem:[%s276 + $0xd0] sm:$0xff]
      %v312 = vld [vmem:[%s276 + $0xd8] sm:$0xff]
      %v313 = vld [vmem:[%s276 + $0xe0] sm:$0xff]
      %v314 = vld [vmem:[%s276 + $0xe8] sm:$0xff]
      %v315 = vld [vmem:[%s276 + $0xf0] sm:$0xff]
      %v316 = vld [vmem:[%s276 + $0xf8] sm:$0xff]
      %v317 = vpack.c.bf16 %v286, %v285
      %v318 = vpack.c.bf16 %v288, %v287
      %v319 = vpack.c.bf16 %v290, %v289
      %v320 = vpack.c.bf16 %v292, %v291
      %v321 = vpack.c.bf16 %v294, %v293
      %v322 = vpack.c.bf16 %v296, %v295
      %v323 = vpack.c.bf16 %v298, %v297
      %v324 = vpack.c.bf16 %v300, %v299
      %v325 = vpack.c.bf16 %v302, %v301
      %v326 = vpack.c.bf16 %v304, %v303
      %v327 = vpack.c.bf16 %v306, %v305
      %v328 = vpack.c.bf16 %v308, %v307
      %v329 = vpack.c.bf16 %v310, %v309
      %v330 = vpack.c.bf16 %v312, %v311
      %v331 = vpack.c.bf16 %v314, %v313
      %v332 = vpack.c.bf16 %v316, %v315
      %v333 = vld [vmem:[%s1] sm:$0xf]
      %v334 = vld [vmem:[%s1 + $0x4] sm:$0xf]
      %v335 = vld [vmem:[%s1 + $0x8] sm:$0xf]
      %v336 = vld [vmem:[%s1 + $0xc] sm:$0xf]
      %v341 = vunpack.c.l.b16 %v333
      %v342 = vunpack.c.l.b16 %v334
      %v343 = vunpack.c.l.b16 %v335
      %v344 = vunpack.c.l.b16 %v336
      %v345 = vpack.c.b16 %v342, %v341
      %v346 = vpack.c.b16 %v344, %v343
      %vm349 = vcmask 261120
      %v351 = vsel %vm349, %v317, 0
      %v354 = vsel %vm349, %v318, 0
      %v357 = vsel %vm349, %v319, 0
      %v360 = vsel %vm349, %v320, 0
      %v363 = vsel %vm349, %v321, 0
      %v366 = vsel %vm349, %v322, 0
      %v369 = vsel %vm349, %v323, 0
      %v372 = vsel %vm349, %v324, 0
      %v375 = vsel %vm349, %v325, 0
      %v378 = vsel %vm349, %v326, 0
      %v381 = vsel %vm349, %v327, 0
      %v384 = vsel %vm349, %v328, 0
      %v387 = vsel %vm349, %v329, 0
      %v390 = vsel %vm349, %v330, 0
      %v393 = vsel %vm349, %v331, 0
      %v396 = vsel %vm349, %v332, 0
      %398 = vmatprep.subr.bf16.mxu0 0
      %399 = vmatpush1.bf16.msra.mxu0 0
      %400 = vmatprep.subr.bf16.mxu0 0
      %401 = vmatpush1.bf16.msra.mxu0 0
      %402 = vmatprep.subr.bf16.mxu0 0
      %403 = vmatpush1.bf16.msra.mxu0 0
      %404 = vmatprep.subr.bf16.mxu0 0
      %405 = vmatpush1.bf16.msra.mxu0 0
      %406 = vmatprep.subr.bf16.mxu0 0
      %407 = vmatpush1.bf16.msra.mxu0 0
      %408 = vmatprep.subr.bf16.mxu0 0
      %409 = vmatpush1.bf16.msra.mxu0 0
      %410 = vmatprep.subr.bf16.mxu0 0
      %411 = vmatpush1.bf16.msra.mxu0 %v346
      %412 = vmatprep.subr.bf16.mxu0 0
      %413 = vmatpush1.bf16.msra.mxu0 %v345
      %414 = vmatprep.subr.bf16.mxu0 0
      %415 = vmatpush2.bf16.msra.mxu0 0
      %416 = vmatprep.subr.bf16.mxu0 0
      %417 = vmatpush2.bf16.msra.mxu0 0
      %418 = vmatprep.subr.bf16.mxu0 0
      %419 = vmatpush2.bf16.msra.mxu0 0
      %420 = vmatprep.subr.bf16.mxu0 0
      %421 = vmatpush2.bf16.msra.mxu0 0
      %422 = vmatprep.subr.bf16.mxu0 0
      %423 = vmatpush2.bf16.msra.mxu0 0
      %424 = vmatprep.subr.bf16.mxu0 0
      %425 = vmatpush2.bf16.msra.mxu0 0
      %426 = vmatprep.subr.bf16.mxu0 0
      %427 = vmatpush2.bf16.msra.mxu0 0
      %428 = vmatprep.subr.bf16.mxu0 0
      %429 = vmatpush2.bf16.msra.mxu0 0
      %430 = vmatprep.mubr.bf16.mxu0 0
      %431 = vmatmul.mubr.bf16.gmra.mxu0 %v351
      %v432 = vpop.f32.mrf.mxu0
      %v433 = vadd.f32 0.0, %v432
      %v434 = vpop.f32.mrf.mxu0
      %v435 = vpop.f32.mrf.mxu0
      %v436 = vadd.f32 0.0, %v435
      %v437 = vpop.f32.mrf.mxu0
      %438 = vmatprep.mubr.bf16.mxu0 0
      %439 = vmatmul.mubr.bf16.gmra.mxu0 %v354
      %v440 = vpop.f32.mrf.mxu0
      %v441 = vadd.f32 0.0, %v440
      %v442 = vpop.f32.mrf.mxu0
      %v443 = vpop.f32.mrf.mxu0
      %v444 = vadd.f32 0.0, %v443
      %v445 = vpop.f32.mrf.mxu0
      %446 = vmatprep.mubr.bf16.mxu0 0
      %447 = vmatmul.mubr.bf16.gmra.mxu0 %v357
      %v448 = vpop.f32.mrf.mxu0
      %v449 = vadd.f32 0.0, %v448
      %v450 = vpop.f32.mrf.mxu0
      %v451 = vpop.f32.mrf.mxu0
      %v452 = vadd.f32 0.0, %v451
      %v453 = vpop.f32.mrf.mxu0
      %454 = vmatprep.mubr.bf16.mxu0 0
      %455 = vmatmul.mubr.bf16.gmra.mxu0 %v360
      %v456 = vpop.f32.mrf.mxu0
      %v457 = vadd.f32 0.0, %v456
      %v458 = vpop.f32.mrf.mxu0
      %v459 = vpop.f32.mrf.mxu0
      %v460 = vadd.f32 0.0, %v459
      %v461 = vpop.f32.mrf.mxu0
      %462 = vmatprep.mubr.bf16.mxu0 0
      %463 = vmatmul.mubr.bf16.gmra.mxu0 %v363
      %v464 = vpop.f32.mrf.mxu0
      %v465 = vadd.f32 0.0, %v464
      %v466 = vpop.f32.mrf.mxu0
      %v467 = vpop.f32.mrf.mxu0
      %v468 = vadd.f32 0.0, %v467
      %v469 = vpop.f32.mrf.mxu0
      %470 = vmatprep.mubr.bf16.mxu0 0
      %471 = vmatmul.mubr.bf16.gmra.mxu0 %v366
      %v472 = vpop.f32.mrf.mxu0
      %v473 = vadd.f32 0.0, %v472
      %v474 = vpop.f32.mrf.mxu0
      %v475 = vpop.f32.mrf.mxu0
      %v476 = vadd.f32 0.0, %v475
      %v477 = vpop.f32.mrf.mxu0
      %478 = vmatprep.mubr.bf16.mxu0 0
      %479 = vmatmul.mubr.bf16.gmra.mxu0 %v369
      %v480 = vpop.f32.mrf.mxu0
      %v481 = vadd.f32 0.0, %v480
      %v482 = vpop.f32.mrf.mxu0
      %v483 = vpop.f32.mrf.mxu0
      %v484 = vadd.f32 0.0, %v483
      %v485 = vpop.f32.mrf.mxu0
      %486 = vmatprep.mubr.bf16.mxu0 0
      %487 = vmatmul.mubr.bf16.gmra.mxu0 %v372
      %v488 = vpop.f32.mrf.mxu0
      %v489 = vadd.f32 0.0, %v488
      %v490 = vpop.f32.mrf.mxu0
      %v491 = vpop.f32.mrf.mxu0
      %v492 = vadd.f32 0.0, %v491
      %v493 = vpop.f32.mrf.mxu0
      %494 = vmatprep.mubr.bf16.mxu0 0
      %495 = vmatmul.mubr.bf16.gmra.mxu0 %v375
      %v496 = vpop.f32.mrf.mxu0
      %v497 = vadd.f32 0.0, %v496
      %v498 = vpop.f32.mrf.mxu0
      %v499 = vpop.f32.mrf.mxu0
      %v500 = vadd.f32 0.0, %v499
      %v501 = vpop.f32.mrf.mxu0
      %502 = vmatprep.mubr.bf16.mxu0 0
      %503 = vmatmul.mubr.bf16.gmra.mxu0 %v378
      %v504 = vpop.f32.mrf.mxu0
      %v505 = vadd.f32 0.0, %v504
      %v506 = vpop.f32.mrf.mxu0
      %v507 = vpop.f32.mrf.mxu0
      %v508 = vadd.f32 0.0, %v507
      %v509 = vpop.f32.mrf.mxu0
      %510 = vmatprep.mubr.bf16.mxu0 0
      %511 = vmatmul.mubr.bf16.gmra.mxu0 %v381
      %v512 = vpop.f32.mrf.mxu0
      %v513 = vadd.f32 0.0, %v512
      %v514 = vpop.f32.mrf.mxu0
      %v515 = vpop.f32.mrf.mxu0
      %v516 = vadd.f32 0.0, %v515
      %v517 = vpop.f32.mrf.mxu0
      %518 = vmatprep.mubr.bf16.mxu0 0
      %519 = vmatmul.mubr.bf16.gmra.mxu0 %v384
      %v520 = vpop.f32.mrf.mxu0
      %v521 = vadd.f32 0.0, %v520
      %v522 = vpop.f32.mrf.mxu0
      %v523 = vpop.f32.mrf.mxu0
      %v524 = vadd.f32 0.0, %v523
      %v525 = vpop.f32.mrf.mxu0
      %526 = vmatprep.mubr.bf16.mxu0 0
      %527 = vmatmul.mubr.bf16.gmra.mxu0 %v387
      %v528 = vpop.f32.mrf.mxu0
      %v529 = vadd.f32 0.0, %v528
      %v530 = vpop.f32.mrf.mxu0
      %v531 = vpop.f32.mrf.mxu0
      %v532 = vadd.f32 0.0, %v531
      %v533 = vpop.f32.mrf.mxu0
      %534 = vmatprep.mubr.bf16.mxu0 0
      %535 = vmatmul.mubr.bf16.gmra.mxu0 %v390
      %v536 = vpop.f32.mrf.mxu0
      %v537 = vadd.f32 0.0, %v536
      %v538 = vpop.f32.mrf.mxu0
      %v539 = vpop.f32.mrf.mxu0
      %v540 = vadd.f32 0.0, %v539
      %v541 = vpop.f32.mrf.mxu0
      %542 = vmatprep.mubr.bf16.mxu0 0
      %543 = vmatmul.mubr.bf16.gmra.mxu0 %v393
      %v544 = vpop.f32.mrf.mxu0
      %v545 = vadd.f32 0.0, %v544
      %v546 = vpop.f32.mrf.mxu0
      %v547 = vpop.f32.mrf.mxu0
      %v548 = vadd.f32 0.0, %v547
      %v549 = vpop.f32.mrf.mxu0
      %550 = vmatprep.mubr.bf16.mxu0 0
      %551 = vmatmul.mubr.bf16.gmra.mxu0 %v396
      %v552 = vpop.f32.mrf.mxu0
      %v553 = vadd.f32 0.0, %v552
      %v554 = vpop.f32.mrf.mxu0
      %v555 = vpop.f32.mrf.mxu0
      %v556 = vadd.f32 0.0, %v555
      %v557 = vpop.f32.mrf.mxu0
      %558 = vdwg.mxu0
      %v559 = vld [vmem:[%s4] sm:$0x1]
      %v561 = vlaneseq
      %v562 = vshrl.u32 %v561, 7
      %v563 = vsub.s32 0, %v562
      %v564 = vrot.slane %v559, %v563
      %v566 = vadd.f32 %v433, %v564
      %v567 = vadd.f32 %v436, %v564
      %v568 = vadd.f32 %v441, %v564
      %v569 = vadd.f32 %v444, %v564
      %v570 = vadd.f32 %v449, %v564
      %v571 = vadd.f32 %v452, %v564
      %v572 = vadd.f32 %v457, %v564
      %v573 = vadd.f32 %v460, %v564
      %v574 = vadd.f32 %v465, %v564
      %v575 = vadd.f32 %v468, %v564
      %v576 = vadd.f32 %v473, %v564
      %v577 = vadd.f32 %v476, %v564
      %v578 = vadd.f32 %v481, %v564
      %v579 = vadd.f32 %v484, %v564
      %v580 = vadd.f32 %v489, %v564
      %v581 = vadd.f32 %v492, %v564
      %v582 = vadd.f32 %v497, %v564
      %v583 = vadd.f32 %v500, %v564
      %v584 = vadd.f32 %v505, %v564
      %v585 = vadd.f32 %v508, %v564
      %v586 = vadd.f32 %v513, %v564
      %v587 = vadd.f32 %v516, %v564
      %v588 = vadd.f32 %v521, %v564
      %v589 = vadd.f32 %v524, %v564
      %v590 = vadd.f32 %v529, %v564
      %v591 = vadd.f32 %v532, %v564
      %v592 = vadd.f32 %v537, %v564
      %v593 = vadd.f32 %v540, %v564
      %v594 = vadd.f32 %v545, %v564
      %v595 = vadd.f32 %v548, %v564
      %v596 = vadd.f32 %v553, %v564
      %v597 = vadd.f32 %v556, %v564
      %v598 = vmax.f32 %v566, 0.0
      %v599 = vmax.f32 %v567, 0.0
      %v600 = vmax.f32 %v568, 0.0
      %v601 = vmax.f32 %v569, 0.0
      %v602 = vmax.f32 %v570, 0.0
      %v603 = vmax.f32 %v571, 0.0
      %v604 = vmax.f32 %v572, 0.0
      %v605 = vmax.f32 %v573, 0.0
      %v606 = vmax.f32 %v574, 0.0
      %v607 = vmax.f32 %v575, 0.0
      %v608 = vmax.f32 %v576, 0.0
      %v609 = vmax.f32 %v577, 0.0
      %v610 = vmax.f32 %v578, 0.0
      %v611 = vmax.f32 %v579, 0.0
      %v612 = vmax.f32 %v580, 0.0
      %v613 = vmax.f32 %v581, 0.0
      %v614 = vmax.f32 %v582, 0.0
      %v615 = vmax.f32 %v583, 0.0
      %v616 = vmax.f32 %v584, 0.0
      %v617 = vmax.f32 %v585, 0.0
      %v618 = vmax.f32 %v586, 0.0
      %v619 = vmax.f32 %v587, 0.0
      %v620 = vmax.f32 %v588, 0.0
      %v621 = vmax.f32 %v589, 0.0
      %v622 = vmax.f32 %v590, 0.0
      %v623 = vmax.f32 %v591, 0.0
      %v624 = vmax.f32 %v592, 0.0
      %v625 = vmax.f32 %v593, 0.0
      %v626 = vmax.f32 %v594, 0.0
      %v627 = vmax.f32 %v595, 0.0
      %v628 = vmax.f32 %v596, 0.0
      %v629 = vmax.f32 %v597, 0.0
      %v630 = vpack.c.bf16 %v599, %v598
      %v631 = vpack.c.bf16 %v601, %v600
      %v632 = vpack.c.bf16 %v603, %v602
      %v633 = vpack.c.bf16 %v605, %v604
      %v634 = vpack.c.bf16 %v607, %v606
      %v635 = vpack.c.bf16 %v609, %v608
      %v636 = vpack.c.bf16 %v611, %v610
      %v637 = vpack.c.bf16 %v613, %v612
      %v638 = vpack.c.bf16 %v615, %v614
      %v639 = vpack.c.bf16 %v617, %v616
      %v640 = vpack.c.bf16 %v619, %v618
      %v641 = vpack.c.bf16 %v621, %v620
      %v642 = vpack.c.bf16 %v623, %v622
      %v643 = vpack.c.bf16 %v625, %v624
      %v644 = vpack.c.bf16 %v627, %v626
      %v645 = vpack.c.bf16 %v629, %v628
      %v646 = vld [vmem:[%s2] sm:$0xf]
      %v647 = vld [vmem:[%s2 + $0x4] sm:$0xf]
      %v648 = vld [vmem:[%s2 + $0x8] sm:$0xf]
      %v649 = vld [vmem:[%s2 + $0xc] sm:$0xf]
      %v650 = vld [vmem:[%s2 + $0x10] sm:$0xf]
      %v651 = vld [vmem:[%s2 + $0x14] sm:$0xf]
      %v652 = vld [vmem:[%s2 + $0x18] sm:$0xf]
      %v653 = vld [vmem:[%s2 + $0x1c] sm:$0xf]
      %v662 = vunpack.c.l.b16 %v646
      %v663 = vunpack.c.l.b16 %v647
      %v664 = vunpack.c.l.b16 %v648
      %v665 = vunpack.c.l.b16 %v649
      %v666 = vunpack.c.l.b16 %v650
      %v667 = vunpack.c.l.b16 %v651
      %v668 = vunpack.c.l.b16 %v652
      %v669 = vunpack.c.l.b16 %v653
      %v670 = vpack.c.b16 %v663, %v662
      %v671 = vpack.c.b16 %v665, %v664
      %v672 = vpack.c.b16 %v667, %v666
      %v673 = vpack.c.b16 %v669, %v668
      %710 = vrot.lane.b32.xlu0 %v433, 64
      %v711 = vpop.permute.xlu0 %710
      %712 = vrot.lane.b32.xlu0 %v436, 64
      %v713 = vpop.permute.xlu0 %712
      %714 = vrot.lane.b32.xlu0 %v441, 64
      %v715 = vpop.permute.xlu0 %714
      %716 = vrot.lane.b32.xlu0 %v444, 64
      %v717 = vpop.permute.xlu0 %716
      %718 = vrot.lane.b32.xlu0 %v449, 64
      %v719 = vpop.permute.xlu0 %718
      %720 = vrot.lane.b32.xlu0 %v452, 64
      %v721 = vpop.permute.xlu0 %720
      %722 = vrot.lane.b32.xlu0 %v457, 64
      %v723 = vpop.permute.xlu0 %722
      %724 = vrot.lane.b32.xlu0 %v460, 64
      %v725 = vpop.permute.xlu0 %724
      %726 = vrot.lane.b32.xlu0 %v465, 64
      %v727 = vpop.permute.xlu0 %726
      %728 = vrot.lane.b32.xlu0 %v468, 64
      %v729 = vpop.permute.xlu0 %728
      %730 = vrot.lane.b32.xlu0 %v473, 64
      %v731 = vpop.permute.xlu0 %730
      %732 = vrot.lane.b32.xlu0 %v476, 64
      %v733 = vpop.permute.xlu0 %732
      %734 = vrot.lane.b32.xlu0 %v481, 64
      %v735 = vpop.permute.xlu0 %734
      %736 = vrot.lane.b32.xlu0 %v484, 64
      %v737 = vpop.permute.xlu0 %736
      %738 = vrot.lane.b32.xlu0 %v489, 64
      %v739 = vpop.permute.xlu0 %738
      %740 = vrot.lane.b32.xlu0 %v492, 64
      %v741 = vpop.permute.xlu0 %740
      %742 = vrot.lane.b32.xlu0 %v497, 64
      %v743 = vpop.permute.xlu0 %742
      %744 = vrot.lane.b32.xlu0 %v500, 64
      %v745 = vpop.permute.xlu0 %744
      %746 = vrot.lane.b32.xlu0 %v505, 64
      %v747 = vpop.permute.xlu0 %746
      %748 = vrot.lane.b32.xlu0 %v508, 64
      %v749 = vpop.permute.xlu0 %748
      %750 = vrot.lane.b32.xlu0 %v513, 64
      %v751 = vpop.permute.xlu0 %750
      %752 = vrot.lane.b32.xlu0 %v516, 64
      %v753 = vpop.permute.xlu0 %752
      %754 = vrot.lane.b32.xlu0 %v521, 64
      %v755 = vpop.permute.xlu0 %754
      %756 = vrot.lane.b32.xlu0 %v524, 64
      %v757 = vpop.permute.xlu0 %756
      %758 = vrot.lane.b32.xlu0 %v529, 64
      %v759 = vpop.permute.xlu0 %758
      %760 = vrot.lane.b32.xlu0 %v532, 64
      %v761 = vpop.permute.xlu0 %760
      %762 = vrot.lane.b32.xlu0 %v537, 64
      %v763 = vpop.permute.xlu0 %762
      %764 = vrot.lane.b32.xlu0 %v540, 64
      %v765 = vpop.permute.xlu0 %764
      %766 = vrot.lane.b32.xlu0 %v545, 64
      %v767 = vpop.permute.xlu0 %766
      %768 = vrot.lane.b32.xlu0 %v548, 64
      %v769 = vpop.permute.xlu0 %768
      %770 = vrot.lane.b32.xlu0 %v553, 64
      %v771 = vpop.permute.xlu0 %770
      %772 = vrot.lane.b32.xlu0 %v556, 64
      %v773 = vpop.permute.xlu0 %772
      %vm806 = vcmask 523264
      %v808 = vsel %vm806, %v630, 0
      %v811 = vsel %vm806, %v631, 0
      %v814 = vsel %vm806, %v632, 0
      %v817 = vsel %vm806, %v633, 0
      %v820 = vsel %vm806, %v634, 0
      %v823 = vsel %vm806, %v635, 0
      %v826 = vsel %vm806, %v636, 0
      %v829 = vsel %vm806, %v637, 0
      %v832 = vsel %vm806, %v638, 0
      %v835 = vsel %vm806, %v639, 0
      %v838 = vsel %vm806, %v640, 0
      %v841 = vsel %vm806, %v641, 0
      %v844 = vsel %vm806, %v642, 0
      %v847 = vsel %vm806, %v643, 0
      %v850 = vsel %vm806, %v644, 0
      %v853 = vsel %vm806, %v645, 0
      %855 = vmatprep.subr.bf16.mxu0 0
      %856 = vmatpush1.bf16.msra.mxu0 0
      %857 = vmatprep.subr.bf16.mxu0 0
      %858 = vmatpush1.bf16.msra.mxu0 0
      %859 = vmatprep.subr.bf16.mxu0 0
      %860 = vmatpush1.bf16.msra.mxu0 0
      %861 = vmatprep.subr.bf16.mxu0 0
      %862 = vmatpush1.bf16.msra.mxu0 0
      %863 = vmatprep.subr.bf16.mxu0 0
      %864 = vmatpush1.bf16.msra.mxu0 %v673
      %865 = vmatprep.subr.bf16.mxu0 0
      %866 = vmatpush1.bf16.msra.mxu0 %v672
      %867 = vmatprep.subr.bf16.mxu0 0
      %868 = vmatpush1.bf16.msra.mxu0 %v671
      %869 = vmatprep.subr.bf16.mxu0 0
      %870 = vmatpush1.bf16.msra.mxu0 %v670
      %871 = vmatprep.subr.bf16.mxu0 0
      %872 = vmatpush2.bf16.msra.mxu0 0
      %873 = vmatprep.subr.bf16.mxu0 0
      %874 = vmatpush2.bf16.msra.mxu0 0
      %875 = vmatprep.subr.bf16.mxu0 0
      %876 = vmatpush2.bf16.msra.mxu0 0
      %877 = vmatprep.subr.bf16.mxu0 0
      %878 = vmatpush2.bf16.msra.mxu0 0
      %879 = vmatprep.subr.bf16.mxu0 0
      %880 = vmatpush2.bf16.msra.mxu0 0
      %881 = vmatprep.subr.bf16.mxu0 0
      %882 = vmatpush2.bf16.msra.mxu0 0
      %883 = vmatprep.subr.bf16.mxu0 0
      %884 = vmatpush2.bf16.msra.mxu0 0
      %885 = vmatprep.subr.bf16.mxu0 0
      %886 = vmatpush2.bf16.msra.mxu0 0
      %887 = vmatprep.mubr.bf16.mxu0 0
      %888 = vmatmul.mubr.bf16.gmra.mxu0 %v808
      %v889 = vpop.f32.mrf.mxu0
      %v890 = vadd.f32 %v711, %v889
      %v891 = vpop.f32.mrf.mxu0
      %v892 = vpop.f32.mrf.mxu0
      %v893 = vadd.f32 %v713, %v892
      %v894 = vpop.f32.mrf.mxu0
      %895 = vmatprep.mubr.bf16.mxu0 0
      %896 = vmatmul.mubr.bf16.gmra.mxu0 %v811
      %v897 = vpop.f32.mrf.mxu0
      %v898 = vadd.f32 %v715, %v897
      %v899 = vpop.f32.mrf.mxu0
      %v900 = vpop.f32.mrf.mxu0
      %v901 = vadd.f32 %v717, %v900
      %v902 = vpop.f32.mrf.mxu0
      %903 = vmatprep.mubr.bf16.mxu0 0
      %904 = vmatmul.mubr.bf16.gmra.mxu0 %v814
      %v905 = vpop.f32.mrf.mxu0
      %v906 = vadd.f32 %v719, %v905
      %v907 = vpop.f32.mrf.mxu0
      %v908 = vpop.f32.mrf.mxu0
      %v909 = vadd.f32 %v721, %v908
      %v910 = vpop.f32.mrf.mxu0
      %911 = vmatprep.mubr.bf16.mxu0 0
      %912 = vmatmul.mubr.bf16.gmra.mxu0 %v817
      %v913 = vpop.f32.mrf.mxu0
      %v914 = vadd.f32 %v723, %v913
      %v915 = vpop.f32.mrf.mxu0
      %v916 = vpop.f32.mrf.mxu0
      %v917 = vadd.f32 %v725, %v916
      %v918 = vpop.f32.mrf.mxu0
      %919 = vmatprep.mubr.bf16.mxu0 0
      %920 = vmatmul.mubr.bf16.gmra.mxu0 %v820
      %v921 = vpop.f32.mrf.mxu0
      %v922 = vadd.f32 %v727, %v921
      %v923 = vpop.f32.mrf.mxu0
      %v924 = vpop.f32.mrf.mxu0
      %v925 = vadd.f32 %v729, %v924
      %v926 = vpop.f32.mrf.mxu0
      %927 = vmatprep.mubr.bf16.mxu0 0
      %928 = vmatmul.mubr.bf16.gmra.mxu0 %v823
      %v929 = vpop.f32.mrf.mxu0
      %v930 = vadd.f32 %v731, %v929
      %v931 = vpop.f32.mrf.mxu0
      %v932 = vpop.f32.mrf.mxu0
      %v933 = vadd.f32 %v733, %v932
      %v934 = vpop.f32.mrf.mxu0
      %935 = vmatprep.mubr.bf16.mxu0 0
      %936 = vmatmul.mubr.bf16.gmra.mxu0 %v826
      %v937 = vpop.f32.mrf.mxu0
      %v938 = vadd.f32 %v735, %v937
      %v939 = vpop.f32.mrf.mxu0
      %v940 = vpop.f32.mrf.mxu0
      %v941 = vadd.f32 %v737, %v940
      %v942 = vpop.f32.mrf.mxu0
      %943 = vmatprep.mubr.bf16.mxu0 0
      %944 = vmatmul.mubr.bf16.gmra.mxu0 %v829
      %v945 = vpop.f32.mrf.mxu0
      %v946 = vadd.f32 %v739, %v945
      %v947 = vpop.f32.mrf.mxu0
      %v948 = vpop.f32.mrf.mxu0
      %v949 = vadd.f32 %v741, %v948
      %v950 = vpop.f32.mrf.mxu0
      %951 = vmatprep.mubr.bf16.mxu0 0
      %952 = vmatmul.mubr.bf16.gmra.mxu0 %v832
      %v953 = vpop.f32.mrf.mxu0
      %v954 = vadd.f32 %v743, %v953
      %v955 = vpop.f32.mrf.mxu0
      %v956 = vpop.f32.mrf.mxu0
      %v957 = vadd.f32 %v745, %v956
      %v958 = vpop.f32.mrf.mxu0
      %959 = vmatprep.mubr.bf16.mxu0 0
      %960 = vmatmul.mubr.bf16.gmra.mxu0 %v835
      %v961 = vpop.f32.mrf.mxu0
      %v962 = vadd.f32 %v747, %v961
      %v963 = vpop.f32.mrf.mxu0
      %v964 = vpop.f32.mrf.mxu0
      %v965 = vadd.f32 %v749, %v964
      %v966 = vpop.f32.mrf.mxu0
      %967 = vmatprep.mubr.bf16.mxu0 0
      %968 = vmatmul.mubr.bf16.gmra.mxu0 %v838
      %v969 = vpop.f32.mrf.mxu0
      %v970 = vadd.f32 %v751, %v969
      %v971 = vpop.f32.mrf.mxu0
      %v972 = vpop.f32.mrf.mxu0
      %v973 = vadd.f32 %v753, %v972
      %v974 = vpop.f32.mrf.mxu0
      %975 = vmatprep.mubr.bf16.mxu0 0
      %976 = vmatmul.mubr.bf16.gmra.mxu0 %v841
      %v977 = vpop.f32.mrf.mxu0
      %v978 = vadd.f32 %v755, %v977
      %v979 = vpop.f32.mrf.mxu0
      %v980 = vpop.f32.mrf.mxu0
      %v981 = vadd.f32 %v757, %v980
      %v982 = vpop.f32.mrf.mxu0
      %983 = vmatprep.mubr.bf16.mxu0 0
      %984 = vmatmul.mubr.bf16.gmra.mxu0 %v844
      %v985 = vpop.f32.mrf.mxu0
      %v986 = vadd.f32 %v759, %v985
      %v987 = vpop.f32.mrf.mxu0
      %v988 = vpop.f32.mrf.mxu0
      %v989 = vadd.f32 %v761, %v988
      %v990 = vpop.f32.mrf.mxu0
      %991 = vmatprep.mubr.bf16.mxu0 0
      %992 = vmatmul.mubr.bf16.gmra.mxu0 %v847
      %v993 = vpop.f32.mrf.mxu0
      %v994 = vadd.f32 %v763, %v993
      %v995 = vpop.f32.mrf.mxu0
      %v996 = vpop.f32.mrf.mxu0
      %v997 = vadd.f32 %v765, %v996
      %v998 = vpop.f32.mrf.mxu0
      %999 = vmatprep.mubr.bf16.mxu0 0
      %1000 = vmatmul.mubr.bf16.gmra.mxu0 %v850
      %v1001 = vpop.f32.mrf.mxu0
      %v1002 = vadd.f32 %v767, %v1001
      %v1003 = vpop.f32.mrf.mxu0
      %v1004 = vpop.f32.mrf.mxu0
      %v1005 = vadd.f32 %v769, %v1004
      %v1006 = vpop.f32.mrf.mxu0
      %1007 = vmatprep.mubr.bf16.mxu0 0
      %1008 = vmatmul.mubr.bf16.gmra.mxu0 %v853
      %v1009 = vpop.f32.mrf.mxu0
      %v1010 = vadd.f32 %v771, %v1009
      %v1011 = vpop.f32.mrf.mxu0
      %v1012 = vpop.f32.mrf.mxu0
      %v1013 = vadd.f32 %v773, %v1012
      %v1014 = vpop.f32.mrf.mxu0
      %1015 = vdwg.mxu0
      %v1016 = vld [vmem:[%s5] sm:$0x1]
      %v1018 = vlaneseq
      %v1019 = vshrl.u32 %v1018, 7
      %v1020 = vsub.s32 0, %v1019
      %v1021 = vrot.slane %v1016, %v1020
      %v1023 = vadd.f32 %v890, %v1021
      %v1024 = vadd.f32 %v893, %v1021
      %v1025 = vadd.f32 %v898, %v1021
      %v1026 = vadd.f32 %v901, %v1021
      %v1027 = vadd.f32 %v906, %v1021
      %v1028 = vadd.f32 %v909, %v1021
      %v1029 = vadd.f32 %v914, %v1021
      %v1030 = vadd.f32 %v917, %v1021
      %v1031 = vadd.f32 %v922, %v1021
      %v1032 = vadd.f32 %v925, %v1021
      %v1033 = vadd.f32 %v930, %v1021
      %v1034 = vadd.f32 %v933, %v1021
      %v1035 = vadd.f32 %v938, %v1021
      %v1036 = vadd.f32 %v941, %v1021
      %v1037 = vadd.f32 %v946, %v1021
      %v1038 = vadd.f32 %v949, %v1021
      %v1039 = vadd.f32 %v954, %v1021
      %v1040 = vadd.f32 %v957, %v1021
      %v1041 = vadd.f32 %v962, %v1021
      %v1042 = vadd.f32 %v965, %v1021
      %v1043 = vadd.f32 %v970, %v1021
      %v1044 = vadd.f32 %v973, %v1021
      %v1045 = vadd.f32 %v978, %v1021
      %v1046 = vadd.f32 %v981, %v1021
      %v1047 = vadd.f32 %v986, %v1021
      %v1048 = vadd.f32 %v989, %v1021
      %v1049 = vadd.f32 %v994, %v1021
      %v1050 = vadd.f32 %v997, %v1021
      %v1051 = vadd.f32 %v1002, %v1021
      %v1052 = vadd.f32 %v1005, %v1021
      %v1053 = vadd.f32 %v1010, %v1021
      %v1054 = vadd.f32 %v1013, %v1021
      %v1055 = vmax.f32 %v1023, 0.0
      %v1056 = vmax.f32 %v1024, 0.0
      %v1057 = vmax.f32 %v1025, 0.0
      %v1058 = vmax.f32 %v1026, 0.0
      %v1059 = vmax.f32 %v1027, 0.0
      %v1060 = vmax.f32 %v1028, 0.0
      %v1061 = vmax.f32 %v1029, 0.0
      %v1062 = vmax.f32 %v1030, 0.0
      %v1063 = vmax.f32 %v1031, 0.0
      %v1064 = vmax.f32 %v1032, 0.0
      %v1065 = vmax.f32 %v1033, 0.0
      %v1066 = vmax.f32 %v1034, 0.0
      %v1067 = vmax.f32 %v1035, 0.0
      %v1068 = vmax.f32 %v1036, 0.0
      %v1069 = vmax.f32 %v1037, 0.0
      %v1070 = vmax.f32 %v1038, 0.0
      %v1071 = vmax.f32 %v1039, 0.0
      %v1072 = vmax.f32 %v1040, 0.0
      %v1073 = vmax.f32 %v1041, 0.0
      %v1074 = vmax.f32 %v1042, 0.0
      %v1075 = vmax.f32 %v1043, 0.0
      %v1076 = vmax.f32 %v1044, 0.0
      %v1077 = vmax.f32 %v1045, 0.0
      %v1078 = vmax.f32 %v1046, 0.0
      %v1079 = vmax.f32 %v1047, 0.0
      %v1080 = vmax.f32 %v1048, 0.0
      %v1081 = vmax.f32 %v1049, 0.0
      %v1082 = vmax.f32 %v1050, 0.0
      %v1083 = vmax.f32 %v1051, 0.0
      %v1084 = vmax.f32 %v1052, 0.0
      %v1085 = vmax.f32 %v1053, 0.0
      %v1086 = vmax.f32 %v1054, 0.0
      %v1087 = vld [vmem:[%s3] sm:$0x1]
      %v1089 = vlaneseq
      %v1090 = vshrl.u32 %v1089, 7
      %v1091 = vsub.s32 0, %v1090
      %v1092 = vrot.slane %v1087, %v1091
      %v1094 = vmul.f32 %v1055, %v1092
      %v1095 = vmul.f32 %v1056, %v1092
      %v1096 = vmul.f32 %v1057, %v1092
      %v1097 = vmul.f32 %v1058, %v1092
      %v1098 = vmul.f32 %v1059, %v1092
      %v1099 = vmul.f32 %v1060, %v1092
      %v1100 = vmul.f32 %v1061, %v1092
      %v1101 = vmul.f32 %v1062, %v1092
      %v1102 = vmul.f32 %v1063, %v1092
      %v1103 = vmul.f32 %v1064, %v1092
      %v1104 = vmul.f32 %v1065, %v1092
      %v1105 = vmul.f32 %v1066, %v1092
      %v1106 = vmul.f32 %v1067, %v1092
      %v1107 = vmul.f32 %v1068, %v1092
      %v1108 = vmul.f32 %v1069, %v1092
      %v1109 = vmul.f32 %v1070, %v1092
      %v1110 = vmul.f32 %v1071, %v1092
      %v1111 = vmul.f32 %v1072, %v1092
      %v1112 = vmul.f32 %v1073, %v1092
      %v1113 = vmul.f32 %v1074, %v1092
      %v1114 = vmul.f32 %v1075, %v1092
      %v1115 = vmul.f32 %v1076, %v1092
      %v1116 = vmul.f32 %v1077, %v1092
      %v1117 = vmul.f32 %v1078, %v1092
      %v1118 = vmul.f32 %v1079, %v1092
      %v1119 = vmul.f32 %v1080, %v1092
      %v1120 = vmul.f32 %v1081, %v1092
      %v1121 = vmul.f32 %v1082, %v1092
      %v1122 = vmul.f32 %v1083, %v1092
      %v1123 = vmul.f32 %v1084, %v1092
      %v1124 = vmul.f32 %v1085, %v1092
      %v1125 = vmul.f32 %v1086, %v1092
      %vm1126 = vcmask 392192
      %v1127 = vsel %vm1126, %v1094, 0.0
      %1128 = vadd.xlane.f32.xlu0 %v1127
      %v1129 = vpop.xlane.xlu0 %1128
      %v1130 = vsel %vm1126, %v1095, 0.0
      %1131 = vadd.xlane.f32.xlu0 %v1130
      %v1132 = vpop.xlane.xlu0 %1131
      %v1133 = vsel %vm1126, %v1096, 0.0
      %1134 = vadd.xlane.f32.xlu0 %v1133
      %v1135 = vpop.xlane.xlu0 %1134
      %v1136 = vsel %vm1126, %v1097, 0.0
      %1137 = vadd.xlane.f32.xlu0 %v1136
      %v1138 = vpop.xlane.xlu0 %1137
      %v1139 = vsel %vm1126, %v1098, 0.0
      %1140 = vadd.xlane.f32.xlu0 %v1139
      %v1141 = vpop.xlane.xlu0 %1140
      %v1142 = vsel %vm1126, %v1099, 0.0
      %1143 = vadd.xlane.f32.xlu0 %v1142
      %v1144 = vpop.xlane.xlu0 %1143
      %v1145 = vsel %vm1126, %v1100, 0.0
      %1146 = vadd.xlane.f32.xlu0 %v1145
      %v1147 = vpop.xlane.xlu0 %1146
      %v1148 = vsel %vm1126, %v1101, 0.0
      %1149 = vadd.xlane.f32.xlu0 %v1148
      %v1150 = vpop.xlane.xlu0 %1149
      %v1151 = vsel %vm1126, %v1102, 0.0
      %1152 = vadd.xlane.f32.xlu0 %v1151
      %v1153 = vpop.xlane.xlu0 %1152
      %v1154 = vsel %vm1126, %v1103, 0.0
      %1155 = vadd.xlane.f32.xlu0 %v1154
      %v1156 = vpop.xlane.xlu0 %1155
      %v1157 = vsel %vm1126, %v1104, 0.0
      %1158 = vadd.xlane.f32.xlu0 %v1157
      %v1159 = vpop.xlane.xlu0 %1158
      %v1160 = vsel %vm1126, %v1105, 0.0
      %1161 = vadd.xlane.f32.xlu0 %v1160
      %v1162 = vpop.xlane.xlu0 %1161
      %v1163 = vsel %vm1126, %v1106, 0.0
      %1164 = vadd.xlane.f32.xlu0 %v1163
      %v1165 = vpop.xlane.xlu0 %1164
      %v1166 = vsel %vm1126, %v1107, 0.0
      %1167 = vadd.xlane.f32.xlu0 %v1166
      %v1168 = vpop.xlane.xlu0 %1167
      %v1169 = vsel %vm1126, %v1108, 0.0
      %1170 = vadd.xlane.f32.xlu0 %v1169
      %v1171 = vpop.xlane.xlu0 %1170
      %v1172 = vsel %vm1126, %v1109, 0.0
      %1173 = vadd.xlane.f32.xlu0 %v1172
      %v1174 = vpop.xlane.xlu0 %1173
      %v1175 = vsel %vm1126, %v1110, 0.0
      %1176 = vadd.xlane.f32.xlu0 %v1175
      %v1177 = vpop.xlane.xlu0 %1176
      %v1178 = vsel %vm1126, %v1111, 0.0
      %1179 = vadd.xlane.f32.xlu0 %v1178
      %v1180 = vpop.xlane.xlu0 %1179
      %v1181 = vsel %vm1126, %v1112, 0.0
      %1182 = vadd.xlane.f32.xlu0 %v1181
      %v1183 = vpop.xlane.xlu0 %1182
      %v1184 = vsel %vm1126, %v1113, 0.0
      %1185 = vadd.xlane.f32.xlu0 %v1184
      %v1186 = vpop.xlane.xlu0 %1185
      %v1187 = vsel %vm1126, %v1114, 0.0
      %1188 = vadd.xlane.f32.xlu0 %v1187
      %v1189 = vpop.xlane.xlu0 %1188
      %v1190 = vsel %vm1126, %v1115, 0.0
      %1191 = vadd.xlane.f32.xlu0 %v1190
      %v1192 = vpop.xlane.xlu0 %1191
      %v1193 = vsel %vm1126, %v1116, 0.0
      %1194 = vadd.xlane.f32.xlu0 %v1193
      %v1195 = vpop.xlane.xlu0 %1194
      %v1196 = vsel %vm1126, %v1117, 0.0
      %1197 = vadd.xlane.f32.xlu0 %v1196
      %v1198 = vpop.xlane.xlu0 %1197
      %v1199 = vsel %vm1126, %v1118, 0.0
      %1200 = vadd.xlane.f32.xlu0 %v1199
      %v1201 = vpop.xlane.xlu0 %1200
      %v1202 = vsel %vm1126, %v1119, 0.0
      %1203 = vadd.xlane.f32.xlu0 %v1202
      %v1204 = vpop.xlane.xlu0 %1203
      %v1205 = vsel %vm1126, %v1120, 0.0
      %1206 = vadd.xlane.f32.xlu0 %v1205
      %v1207 = vpop.xlane.xlu0 %1206
      %v1208 = vsel %vm1126, %v1121, 0.0
      %1209 = vadd.xlane.f32.xlu0 %v1208
      %v1210 = vpop.xlane.xlu0 %1209
      %v1211 = vsel %vm1126, %v1122, 0.0
      %1212 = vadd.xlane.f32.xlu0 %v1211
      %v1213 = vpop.xlane.xlu0 %1212
      %v1214 = vsel %vm1126, %v1123, 0.0
      %1215 = vadd.xlane.f32.xlu0 %v1214
      %v1216 = vpop.xlane.xlu0 %1215
      %v1217 = vsel %vm1126, %v1124, 0.0
      %1218 = vadd.xlane.f32.xlu0 %v1217
      %v1219 = vpop.xlane.xlu0 %1218
      %v1220 = vsel %vm1126, %v1125, 0.0
      %1221 = vadd.xlane.f32.xlu0 %v1220
      %v1222 = vpop.xlane.xlu0 %1221
      %v1223 = vadd.f32 %v1129, %v433
      %v1224 = vadd.f32 %v1132, %v436
      %v1225 = vadd.f32 %v1135, %v441
      %v1226 = vadd.f32 %v1138, %v444
      %v1227 = vadd.f32 %v1141, %v449
      %v1228 = vadd.f32 %v1144, %v452
      %v1229 = vadd.f32 %v1147, %v457
      %v1230 = vadd.f32 %v1150, %v460
      %v1231 = vadd.f32 %v1153, %v465
      %v1232 = vadd.f32 %v1156, %v468
      %v1233 = vadd.f32 %v1159, %v473
      %v1234 = vadd.f32 %v1162, %v476
      %v1235 = vadd.f32 %v1165, %v481
      %v1236 = vadd.f32 %v1168, %v484
      %v1237 = vadd.f32 %v1171, %v489
      %v1238 = vadd.f32 %v1174, %v492
      %v1239 = vadd.f32 %v1177, %v497
      %v1240 = vadd.f32 %v1180, %v500
      %v1241 = vadd.f32 %v1183, %v505
      %v1242 = vadd.f32 %v1186, %v508
      %v1243 = vadd.f32 %v1189, %v513
      %v1244 = vadd.f32 %v1192, %v516
      %v1245 = vadd.f32 %v1195, %v521
      %v1246 = vadd.f32 %v1198, %v524
      %v1247 = vadd.f32 %v1201, %v529
      %v1248 = vadd.f32 %v1204, %v532
      %v1249 = vadd.f32 %v1207, %v537
      %v1250 = vadd.f32 %v1210, %v540
      %v1251 = vadd.f32 %v1213, %v545
      %v1252 = vadd.f32 %v1216, %v548
      %v1253 = vadd.f32 %v1219, %v553
      %v1254 = vadd.f32 %v1222, %v556
      %v1255 = vld [vmem:[#allocation2] sm:$0x1]
      %v1257 = vlaneseq
      %v1258 = vshrl.u32 %v1257, 7
      %v1259 = vsub.s32 0, %v1258
      %v1260 = vrot.slane %v1255, %v1259
      %1261 = vrot.lane.b32.xlu0 %v1260, 112
      %v1262 = vpop.permute.xlu0 %1261
      %v1264 = vadd.f32 %v1223, %v1262
      %v1265 = vadd.f32 %v1224, %v1262
      %v1266 = vadd.f32 %v1225, %v1262
      %v1267 = vadd.f32 %v1226, %v1262
      %v1268 = vadd.f32 %v1227, %v1262
      %v1269 = vadd.f32 %v1228, %v1262
      %v1270 = vadd.f32 %v1229, %v1262
      %v1271 = vadd.f32 %v1230, %v1262
      %v1272 = vadd.f32 %v1231, %v1262
      %v1273 = vadd.f32 %v1232, %v1262
      %v1274 = vadd.f32 %v1233, %v1262
      %v1275 = vadd.f32 %v1234, %v1262
      %v1276 = vadd.f32 %v1235, %v1262
      %v1277 = vadd.f32 %v1236, %v1262
      %v1278 = vadd.f32 %v1237, %v1262
      %v1279 = vadd.f32 %v1238, %v1262
      %v1280 = vadd.f32 %v1239, %v1262
      %v1281 = vadd.f32 %v1240, %v1262
      %v1282 = vadd.f32 %v1241, %v1262
      %v1283 = vadd.f32 %v1242, %v1262
      %v1284 = vadd.f32 %v1243, %v1262
      %v1285 = vadd.f32 %v1244, %v1262
      %v1286 = vadd.f32 %v1245, %v1262
      %v1287 = vadd.f32 %v1246, %v1262
      %v1288 = vadd.f32 %v1247, %v1262
      %v1289 = vadd.f32 %v1248, %v1262
      %v1290 = vadd.f32 %v1249, %v1262
      %v1291 = vadd.f32 %v1250, %v1262
      %v1292 = vadd.f32 %v1251, %v1262
      %v1293 = vadd.f32 %v1252, %v1262
      %v1294 = vadd.f32 %v1253, %v1262
      %v1295 = vadd.f32 %v1254, %v1262
      %1328 = vrot.lane.b32.xlu0 %v1264, 16
      %v1329 = vpop.permute.xlu0 %1328
      %1330 = vrot.lane.b32.xlu0 %v1265, 16
      %v1331 = vpop.permute.xlu0 %1330
      %1332 = vrot.lane.b32.xlu0 %v1266, 16
      %v1333 = vpop.permute.xlu0 %1332
      %1334 = vrot.lane.b32.xlu0 %v1267, 16
      %v1335 = vpop.permute.xlu0 %1334
      %1336 = vrot.lane.b32.xlu0 %v1268, 16
      %v1337 = vpop.permute.xlu0 %1336
      %1338 = vrot.lane.b32.xlu0 %v1269, 16
      %v1339 = vpop.permute.xlu0 %1338
      %1340 = vrot.lane.b32.xlu0 %v1270, 16
      %v1341 = vpop.permute.xlu0 %1340
      %1342 = vrot.lane.b32.xlu0 %v1271, 16
      %v1343 = vpop.permute.xlu0 %1342
      %1344 = vrot.lane.b32.xlu0 %v1272, 16
      %v1345 = vpop.permute.xlu0 %1344
      %1346 = vrot.lane.b32.xlu0 %v1273, 16
      %v1347 = vpop.permute.xlu0 %1346
      %1348 = vrot.lane.b32.xlu0 %v1274, 16
      %v1349 = vpop.permute.xlu0 %1348
      %1350 = vrot.lane.b32.xlu0 %v1275, 16
      %v1351 = vpop.permute.xlu0 %1350
      %1352 = vrot.lane.b32.xlu0 %v1276, 16
      %v1353 = vpop.permute.xlu0 %1352
      %1354 = vrot.lane.b32.xlu0 %v1277, 16
      %v1355 = vpop.permute.xlu0 %1354
      %1356 = vrot.lane.b32.xlu0 %v1278, 16
      %v1357 = vpop.permute.xlu0 %1356
      %1358 = vrot.lane.b32.xlu0 %v1279, 16
      %v1359 = vpop.permute.xlu0 %1358
      %1360 = vrot.lane.b32.xlu0 %v1280, 16
      %v1361 = vpop.permute.xlu0 %1360
      %1362 = vrot.lane.b32.xlu0 %v1281, 16
      %v1363 = vpop.permute.xlu0 %1362
      %1364 = vrot.lane.b32.xlu0 %v1282, 16
      %v1365 = vpop.permute.xlu0 %1364
      %1366 = vrot.lane.b32.xlu0 %v1283, 16
      %v1367 = vpop.permute.xlu0 %1366
      %1368 = vrot.lane.b32.xlu0 %v1284, 16
      %v1369 = vpop.permute.xlu0 %1368
      %1370 = vrot.lane.b32.xlu0 %v1285, 16
      %v1371 = vpop.permute.xlu0 %1370
      %1372 = vrot.lane.b32.xlu0 %v1286, 16
      %v1373 = vpop.permute.xlu0 %1372
      %1374 = vrot.lane.b32.xlu0 %v1287, 16
      %v1375 = vpop.permute.xlu0 %1374
      %1376 = vrot.lane.b32.xlu0 %v1288, 16
      %v1377 = vpop.permute.xlu0 %1376
      %1378 = vrot.lane.b32.xlu0 %v1289, 16
      %v1379 = vpop.permute.xlu0 %1378
      %1380 = vrot.lane.b32.xlu0 %v1290, 16
      %v1381 = vpop.permute.xlu0 %1380
      %1382 = vrot.lane.b32.xlu0 %v1291, 16
      %v1383 = vpop.permute.xlu0 %1382
      %1384 = vrot.lane.b32.xlu0 %v1292, 16
      %v1385 = vpop.permute.xlu0 %1384
      %1386 = vrot.lane.b32.xlu0 %v1293, 16
      %v1387 = vpop.permute.xlu0 %1386
      %1388 = vrot.lane.b32.xlu0 %v1294, 16
      %v1389 = vpop.permute.xlu0 %1388
      %1390 = vrot.lane.b32.xlu0 %v1295, 16
      %v1391 = vpop.permute.xlu0 %1390
      %vm1424 = vcmask 7168
      %1425 = vst.msk [vmem:[%s282] sm:$0xff] %vm1424, %v1329
      %1426 = vst.msk [vmem:[%s282 + $0x8] sm:$0xff] %vm1424, %v1331
      %1427 = vst.msk [vmem:[%s282 + $0x10] sm:$0xff] %vm1424, %v1333
      %1428 = vst.msk [vmem:[%s282 + $0x18] sm:$0xff] %vm1424, %v1335
      %1429 = vst.msk [vmem:[%s282 + $0x20] sm:$0xff] %vm1424, %v1337
      %1430 = vst.msk [vmem:[%s282 + $0x28] sm:$0xff] %vm1424, %v1339
      %1431 = vst.msk [vmem:[%s282 + $0x30] sm:$0xff] %vm1424, %v1341
      %1432 = vst.msk [vmem:[%s282 + $0x38] sm:$0xff] %vm1424, %v1343
      %1433 = vst.msk [vmem:[%s282 + $0x40] sm:$0xff] %vm1424, %v1345
      %1434 = vst.msk [vmem:[%s282 + $0x48] sm:$0xff] %vm1424, %v1347
      %1435 = vst.msk [vmem:[%s282 + $0x50] sm:$0xff] %vm1424, %v1349
      %1436 = vst.msk [vmem:[%s282 + $0x58] sm:$0xff] %vm1424, %v1351
      %1437 = vst.msk [vmem:[%s282 + $0x60] sm:$0xff] %vm1424, %v1353
      %1438 = vst.msk [vmem:[%s282 + $0x68] sm:$0xff] %vm1424, %v1355
      %1439 = vst.msk [vmem:[%s282 + $0x70] sm:$0xff] %vm1424, %v1357
      %1440 = vst.msk [vmem:[%s282 + $0x78] sm:$0xff] %vm1424, %v1359
      %1441 = vst.msk [vmem:[%s282 + $0x80] sm:$0xff] %vm1424, %v1361
      %1442 = vst.msk [vmem:[%s282 + $0x88] sm:$0xff] %vm1424, %v1363
      %1443 = vst.msk [vmem:[%s282 + $0x90] sm:$0xff] %vm1424, %v1365
      %1444 = vst.msk [vmem:[%s282 + $0x98] sm:$0xff] %vm1424, %v1367
      %1445 = vst.msk [vmem:[%s282 + $0xa0] sm:$0xff] %vm1424, %v1369
      %1446 = vst.msk [vmem:[%s282 + $0xa8] sm:$0xff] %vm1424, %v1371
      %1447 = vst.msk [vmem:[%s282 + $0xb0] sm:$0xff] %vm1424, %v1373
      %1448 = vst.msk [vmem:[%s282 + $0xb8] sm:$0xff] %vm1424, %v1375
      %1449 = vst.msk [vmem:[%s282 + $0xc0] sm:$0xff] %vm1424, %v1377
      %1450 = vst.msk [vmem:[%s282 + $0xc8] sm:$0xff] %vm1424, %v1379
      %1451 = vst.msk [vmem:[%s282 + $0xd0] sm:$0xff] %vm1424, %v1381
      %1452 = vst.msk [vmem:[%s282 + $0xd8] sm:$0xff] %vm1424, %v1383
      %1453 = vst.msk [vmem:[%s282 + $0xe0] sm:$0xff] %vm1424, %v1385
      %1454 = vst.msk [vmem:[%s282 + $0xe8] sm:$0xff] %vm1424, %v1387
      %1455 = vst.msk [vmem:[%s282 + $0xf0] sm:$0xff] %vm1424, %v1389
      %1456 = vst.msk [vmem:[%s282 + $0xf8] sm:$0xff] %vm1424, %v1391
      %s1457 = smul.u32 32, %s20
      %p1458 = scmp.lt.s32.totalorder %s1457, 63
      %s1459 = scalar_select %p1458, %s1457, 63
      %s1460 = smul.addr %s1459, 8
      %s1461 = scalar_lea.vmem %s7, %s1460
      // Predicated region
      $region49: #{tpu_custom_call.1} parent=47 // pred_check
        %p1462 = pneg %p190
      $region50: #{tpu_custom_call.1} parent=47 // pred_check_branch
        %1464 = sbr.rel (%p1462) target = $region52
      $region51: #{tpu_custom_call.1} parent=47 // pred_region
        %s1465 = smul.u32 32, %s20
      $region52: #{tpu_custom_call.1} parent=47 // pred_fallthru
        _
    $region48: #{tpu_custom_call.1} parent=5 // pred_fallthru
      _
    %p1466 = scmp.le.s32.totalorder 2, %s15
    // Predicated region
    $region53: #{tpu_custom_call.1} parent=5 // pred_check
      %p1467 = pneg %p1466
    $region54: #{tpu_custom_call.1} parent=5 // pred_check_branch
      %1469 = sbr.rel (%p1467) target = $region56
    $region55: #{tpu_custom_call.1} parent=5 // pred_region
      %s1470 = ssub.s32 %s15, 2
      // Predicated region
      $region57: #{tpu_custom_call.1} parent=55 // pred_check
        %p1471 = pneg %p196
      $region58: #{tpu_custom_call.1} parent=55 // pred_check_branch
        %1473 = sbr.rel (%p1471) target = $region60
      $region59: #{tpu_custom_call.1} parent=55 // pred_region
        %s1474 = smul.u32 32, %s21
        %p1475 = scmp.lt.s32.totalorder %s1474, 63
        %s1476 = scalar_select %p1475, %s1474, 63
        %s1477 = smul.addr %s1476, 8
        %s1478 = scalar_lea.vmem %s7, %s1477
      $region60: #{tpu_custom_call.1} parent=55 // pred_fallthru
        _
    $region56: #{tpu_custom_call.1} parent=5 // pred_fallthru
      _
  $region6: #{tpu_custom_call.1} parent=0 // loop_footer
    %s19 = sadd.s32 1, %s15
  $region7: #{tpu_custom_call.1} parent=0 // loop_footer_branch
    %14 = sbr.rel target = $region3
  $region8: #{tpu_custom_call.1} parent=0 // loop_exit
    _

</llo_original>
